<compile_context>
chip_gen: v7x
topology: tpu7x:2x2x1
jax: 0.10.0
libtpu: 0.0.40
codegen_flags: <defaults>
</compile_context>

<pallas_src>
import functools

import jax
import jax.numpy as jnp
from jax import lax
from jax.experimental import pallas as pl
from jax.experimental.pallas import tpu as pltpu

_LANE = 128
# (2048, 128) f32 tile = 1 MiB -> ~4 MiB double-buffered in+out; comfortably
# inside the default scoped-VMEM limit on v5e/v6e/v7x.
_MAX_TILE_ROWS = 2048


def _relu_max_kernel(x_ref, o_ref, pmax_ref, *, tile_rows, n_valid, mask):
    """Fused elementwise ReLU + per-tile partial max (f32).

    Writes one (8, 128) partial-max block per grid step; the global max is
    finished outside the kernel.  No cross-iteration state -> "parallel" grid.
    """
    x = x_ref[...]
    # Hot path: one elementwise maximum + one store per tile (HBM-bound).
    o_ref[...] = jnp.maximum(x, 0)

    xf = x.astype(jnp.float32)
    if mask:
        # Emitted at trace time only when there is lane padding or a ragged
        # last row-tile: out-of-range elements never contribute to the max.
        i = pl.program_id(0)
        row_iota = lax.broadcasted_iota(jnp.int32, x.shape, 0)
        col_iota = lax.broadcasted_iota(jnp.int32, x.shape, 1)
        gidx = (i * tile_rows + row_iota) * _LANE + col_iota
        xf = jnp.where(gidx < n_valid, xf, -jnp.inf)

    m = jnp.max(xf, axis=0, keepdims=True)               # (1, 128) sublane reduce
    pmax_ref[...] = jnp.broadcast_to(m, pmax_ref.shape)  # (8, 128) partial block


@functools.partial(jax.jit, static_argnums=(1,))
def _relu_and_max_2d(x2d, n_valid):
    """x2d: (rows, 128) lane-dense slab. Returns (relu(x2d), global_max_f32)."""
    rows, lanes = x2d.shape
    assert lanes == _LANE
    # Full-array block if it fits (always legal regardless of divisibility),
    # otherwise 2048-row tiles (multiple of 8) with a ragged, masked tail.
    tile_rows = rows if rows <= _MAX_TILE_ROWS else _MAX_TILE_ROWS
    n_tiles = pl.cdiv(rows, tile_rows)
    needs_mask = (rows % tile_rows != 0) or (n_valid != rows * _LANE)

    kernel = functools.partial(
        _relu_max_kernel, tile_rows=tile_rows, n_valid=n_valid, mask=needs_mask)

    out, pmax = pl.pallas_call(
        kernel,
        out_shape=(
            jax.ShapeDtypeStruct((rows, _LANE), x2d.dtype),
            jax.ShapeDtypeStruct((n_tiles * 8, _LANE), jnp.float32),
        ),
        grid=(n_tiles,),
        in_specs=[pl.BlockSpec((tile_rows, _LANE), lambda i: (i, 0))],
        out_specs=(
            pl.BlockSpec((tile_rows, _LANE), lambda i: (i, 0)),
            pl.BlockSpec((8, _LANE), lambda i: (i, 0)),
        ),
        compiler_params=pltpu.CompilerParams(
            dimension_semantics=("parallel",)),
    )(x2d)
    return out, jnp.max(pmax)


class BaseConstrsPallas:
    """JAX/Pallas port of snncutoff BaseConstrs.

    forward(x):
      - (optional regularizer loss -- regularizer=None here)
      - training: vthr <- (1 - momentum) * max(x) + momentum * vthr
      - x <- relu(x)
    """

    def __init__(self, T=4, L=4, vthr=8.0, tau=1.0, regularizer=None,
                 momentum=0.9):
        self.vthr = jnp.array([vthr], dtype=jnp.float32)
        self.regularizer = regularizer  # TODO(synk): regularizer loss hook not ported (None in this config).
        self.T = T
        self.L = L
        self.tau = tau
        self.momentum = momentum
        self.training = False

    def __call__(self, x):
        orig_shape = x.shape
        n_elem = x.size
        lane_pad = (-n_elem) % _LANE

        flat = x.reshape(-1)  # metadata-only (row-major), native dtype kept
        if lane_pad:
            # Misaligned case only: one copy to pad to full 128-lane rows.
            # Pad values never affect results (masked for max, sliced off below).
            flat = jnp.pad(flat, (0, lane_pad))
        x2d = flat.reshape(-1, _LANE)

        out2d, gmax = _relu_and_max_2d(x2d, int(n_elem))

        if lane_pad:
            out = out2d.reshape(-1)[:n_elem].reshape(orig_shape)
        else:
            out = out2d.reshape(orig_shape)  # pure metadata reshape, no copy

        if self.training:
            # Python-side stateful update (mirrors the torch buffer copy_);
            # won't auto-update if this wrapper is itself traced under jit.
            self.vthr = ((1.0 - self.momentum) * gmax.astype(jnp.float32)
                         + self.momentum * self.vthr)
        return out


if __name__ == "__main__":
    key = jax.random.PRNGKey(0)

    # Main check: NCHW conv-style input, lane-aligned fast path.
    x = jax.random.normal(key, (2, 4, 16, 16), dtype=jnp.float32)
    module = BaseConstrsPallas(T=4, L=4, vthr=8.0, tau=1.0, regularizer=None,
                               momentum=0.9)
    module.training = True  # exercise max-reduction + EMA path

    y = jax.block_until_ready(module(x))
    vthr = jax.block_until_ready(module.vthr)

    ref_y = jnp.maximum(x, 0.0)
    ref_vthr = (1.0 - 0.9) * jnp.max(x) + 0.9 * jnp.array([8.0], jnp.float32)
    assert jnp.allclose(y, ref_y), "ReLU mismatch"
    assert jnp.allclose(vthr, ref_vthr, rtol=1e-6), "vthr EMA mismatch"

    # Secondary check: misaligned shape exercises the in-kernel mask path.
    x2 = jax.random.normal(jax.random.PRNGKey(1), (3, 5, 7, 11),
                           dtype=jnp.float32)
    module2 = BaseConstrsPallas()
    module2.training = True
    y2 = jax.block_until_ready(module2(x2))
    assert jnp.allclose(y2, jnp.maximum(x2, 0.0)), "ReLU mismatch (masked path)"
    ref_vthr2 = (1.0 - 0.9) * jnp.max(x2) + 0.9 * jnp.array([8.0], jnp.float32)
    assert jnp.allclose(jax.block_until_ready(module2.vthr), ref_vthr2,
                        rtol=1e-6), "vthr EMA mismatch (masked path)"

    print("KERNEL_OK")
</pallas_src>

<mosaic_0001>
module attributes {stable_mosaic.version = 11 : i64} {
  func.func @_relu_max_kernel(%arg0: i32, %arg1: memref<16x128xf32, #tpu.memory_space<vmem>>, %arg2: memref<16x128xf32, #tpu.memory_space<vmem>>, %arg3: memref<8x128xf32, #tpu.memory_space<vmem>>) attributes {dimension_semantics = [#tpu.dimension_semantics<parallel>], iteration_bounds = array<i64: 1>, scalar_prefetch = 0 : i64, scratch_operands = 0 : i64, tpu.core_type = #tpu.core_type<tc>, window_params = [{transform_indices = @transform_0, window_bounds = array<i64: 16, 128>}, {transform_indices = @transform_1, window_bounds = array<i64: 16, 128>}, {transform_indices = @transform_2, window_bounds = array<i64: 8, 128>}]} {
    %c0 = arith.constant 0 : index
    %c0_0 = arith.constant 0 : index
    %0 = vector.load %arg1[%c0, %c0_0] : memref<16x128xf32, #tpu.memory_space<vmem>>, vector<16x128xf32>
    %cst = arith.constant 0.000000e+00 : f32
    %1 = vector.broadcast %cst : f32 to vector<16x128xf32>
    %2 = arith.maximumf %0, %1 : vector<16x128xf32>
    %c0_1 = arith.constant 0 : index
    %c0_2 = arith.constant 0 : index
    %3 = vector.load %arg2[%c0_1, %c0_2] : memref<16x128xf32, #tpu.memory_space<vmem>>, vector<16x128xf32>
    tpu.vector_store %arg2[%c0_1, %c0_2], %2 {strides = array<i32>} : memref<16x128xf32, #tpu.memory_space<vmem>>, vector<16x128xf32>,
    %cst_3 = arith.constant dense<0xFF800000> : vector<128xf32>
    %4 = vector.multi_reduction <maximumf>, %0, %cst_3 [0] : vector<16x128xf32> to vector<128xf32>
    %5 = vector.shape_cast %4 : vector<128xf32> to vector<1x128xf32>
    %6 = vector.shape_cast %5 : vector<1x128xf32> to vector<1x128xf32>
    %7 = vector.broadcast %6 : vector<1x128xf32> to vector<8x128xf32>
    %c0_4 = arith.constant 0 : index
    %c0_5 = arith.constant 0 : index
    %8 = vector.load %arg3[%c0_4, %c0_5] : memref<8x128xf32, #tpu.memory_space<vmem>>, vector<8x128xf32>
    tpu.vector_store %arg3[%c0_4, %c0_5], %7 {strides = array<i32>} : memref<8x128xf32, #tpu.memory_space<vmem>>, vector<8x128xf32>,
    return
  }
  func.func @transform_0(%arg0: i32) -> (i32, i32) {
    %c0_i32 = arith.constant 0 : i32
    %c0_i32_0 = arith.constant 0 : i32
    return %arg0, %c0_i32 : i32, i32
  }
  func.func @transform_1(%arg0: i32) -> (i32, i32) {
    %c0_i32 = arith.constant 0 : i32
    %c0_i32_0 = arith.constant 0 : i32
    return %arg0, %c0_i32 : i32, i32
  }
  func.func @transform_2(%arg0: i32) -> (i32, i32) {
    %c0_i32 = arith.constant 0 : i32
    %c0_i32_0 = arith.constant 0 : i32
    return %arg0, %c0_i32 : i32, i32
  }
}

</mosaic_0001>

<llo_original>
// kernel: _relu_and_max_2d.1
$region0: #{_relu_and_max_2d.1}
  #allocation0 [shape = 'u32[]', space=smem, size = 0x4, offset = 0x4, fixed_abs, tag = 'smem constant byte address 0x4 - core index']
  #allocation1 [shape = 'u32[144,128]{1,0:T(1,128)}', space=vmem, size = 0x12000, scoped, tag = 'internal scratch']
  %s0 = inlined_call_operand.hbm [shape: f32[16,128], index: 0, kind: input, shape index: {}]
  %s1 = inlined_call_operand.hbm [shape: f32[16,128], index: 1, kind: output, shape index: {0}]
  %s2 = inlined_call_operand.vmem [shape: f32[8,128], index: 2, kind: output, shape index: {1}]
  %3 = xla_tuple %s1, %s2
  %s4 = sld [smem:[#allocation0]]
  $region26: #{_relu_and_max_2d.1} parent=0
    _
  %s6 = ssub.s32 1, %s4
  %s7 = scalar_select 0, %s6, %s4
  $region1: #{_relu_and_max_2d.1} parent=0
    #allocation2 [shape = 'u8[8192]{0}', space=vmem, size = 0x2000, scoped, tag = 'input window, operand 0, single buffered']
    #allocation3 [shape = 's32[1]{0}', space=sflag, size = 0x4, scoped, tag = 'scoped memory for _relu_and_max_2d.1']
    #allocation4 [shape = 's32[1]{0}', space=sflag, size = 0x4, scoped, tag = 'scoped memory for _relu_and_max_2d.1']
    #allocation5 [shape = 'u8[8192]{0}', space=vmem, size = 0x2000, scoped, tag = 'output window, operand 0, single buffered']
    %8 = vsyncpa [#allocation3], 0
    %9 = vsyncpa [#allocation4], 0
    // Predicated region
    $region2: #{_relu_and_max_2d.1} parent=1 // pred_check
      _
    $region3: #{_relu_and_max_2d.1} parent=1 // pred_check_branch
      %11 = sbr.rel (0) target = $region5
    $region4: #{_relu_and_max_2d.1} parent=1 // pred_region
      %s13 = ssub.s32 256, 256
      %14 = vsyncadd [#allocation3], %s13
      %s15 = sshll.u32 [#allocation2], 4
      %s16 = int_to_ptr.vmem [resolvable:$true] %s15
      %21 = dma.hbm_to_vmem [thread:$0]  %s0, 256, %s16, [#allocation3], 128, 128, 8
    $region5: #{_relu_and_max_2d.1} parent=1 // pred_fallthru
      _
    // Predicated region
    $region6: #{_relu_and_max_2d.1} parent=1 // pred_check
      _
    $region7: #{_relu_and_max_2d.1} parent=1 // pred_check_branch
      %23 = sbr.rel (0) target = $region9
    $region8: #{_relu_and_max_2d.1} parent=1 // pred_region
      %24 = dma.done [#allocation3], 256
    $region9: #{_relu_and_max_2d.1} parent=1 // pred_fallthru
      _
    %v25 = vld [vmem:[#allocation2] sm:$0xff]
    %v26 = vld [vmem:[#allocation2 + $0x8] sm:$0xff]
    %v27 = vmax.f32 %v25, 0.0
    %v28 = vmax.f32 %v26, 0.0
    %29 = vst [vmem:[#allocation5] sm:$0xff] %v27
    %30 = vst [vmem:[#allocation5 + $0x8] sm:$0xff] %v28
    %v31 = vmax.f32 %v25, %v26
    %v32 = vrot.slane %v31, 4
    %v33 = vmax.f32 %v31, %v32
    %v34 = vrot.slane %v33, 2
    %v35 = vmax.f32 %v33, %v34
    %v36 = vrot.slane %v35, 1
    %v37 = vmax.f32 %v35, %v36
    %38 = vst [vmem:[%s2] sm:$0xff] %v37
    // Predicated region
    $region10: #{_relu_and_max_2d.1} parent=1 // pred_check
      _
    $region11: #{_relu_and_max_2d.1} parent=1 // pred_check_branch
      %40 = sbr.rel (0) target = $region13
    $region12: #{_relu_and_max_2d.1} parent=1 // pred_region
      %s42 = ssub.s32 256, 256
      %43 = vsyncadd [#allocation4], %s42
      %s44 = sshll.u32 [#allocation5], 4
      %s45 = int_to_ptr.vmem [resolvable:$true] %s44
      %50 = dma.vmem_to_hbm [thread:$0]  %s45, 256, %s1, [#allocation4], 128, 128, 8
    $region13: #{_relu_and_max_2d.1} parent=1 // pred_fallthru
      _
    // Predicated region
    $region14: #{_relu_and_max_2d.1} parent=1 // pred_check
      _
    $region15: #{_relu_and_max_2d.1} parent=1 // pred_check_branch
      %52 = sbr.rel (0) target = $region17
    $region16: #{_relu_and_max_2d.1} parent=1 // pred_region
      _
    $region17: #{_relu_and_max_2d.1} parent=1 // pred_fallthru
      _
    // Predicated region
    $region18: #{_relu_and_max_2d.1} parent=1 // pred_check
      _
    $region19: #{_relu_and_max_2d.1} parent=1 // pred_check_branch
      %54 = sbr.rel (0) target = $region21
    $region20: #{_relu_and_max_2d.1} parent=1 // pred_region
      %55 = dma.done [#allocation4], 256
    $region21: #{_relu_and_max_2d.1} parent=1 // pred_fallthru
      _
    // Predicated region
    $region22: #{_relu_and_max_2d.1} parent=1 // pred_check
      _
    $region23: #{_relu_and_max_2d.1} parent=1 // pred_check_branch
      %57 = sbr.rel (0) target = $region25
    $region24: #{_relu_and_max_2d.1} parent=1 // pred_region
      _
    $region25: #{_relu_and_max_2d.1} parent=1 // pred_fallthru
      _
    %58 = vsyncpa [#allocation3], 1
    %59 = vsyncpa [#allocation4], 1

</llo_original>
